<compile_context>
chip_gen: v7x
topology: tpu7x:2x2x1
jax: 0.10.0
libtpu: 0.0.40
codegen_flags: <defaults>
</compile_context>

<pallas_src>
import jax
import jax.numpy as jnp
from jax import lax
from jax.experimental import pallas as pl
from jax.experimental.pallas import tpu as pltpu


def _round_up(x, m):
    return ((x + m - 1) // m) * m


# ----------------------------------------------------------------------------
# Kernel 1: tiled matmul + bias (used for the hoisted input projection of every
# LSTM layer and for the final Linear). bf16 operands, f32 accumulation.
# ----------------------------------------------------------------------------
def _matmul_bias_kernel(x_ref, w_ref, b_ref, o_ref):
    x = x_ref[...].astype(jnp.bfloat16)
    o_ref[...] = (jnp.dot(x, w_ref[...], preferred_element_type=jnp.float32)
                  + b_ref[...])


def matmul_bias(x2d, w_bf16, bias_f32, *, block_rows=512):
    """x2d: (M, K) f32, w_bf16: (K, N) bf16, bias_f32: (1, N) f32 -> (M, N) f32."""
    M, K = x2d.shape
    N = w_bf16.shape[1]
    bm = min(block_rows, _round_up(M, 8))
    m_pad = _round_up(M, bm)
    x_p = jnp.pad(x2d, ((0, m_pad - M), (0, 0))) if m_pad != M else x2d

    out = pl.pallas_call(
        _matmul_bias_kernel,
        out_shape=jax.ShapeDtypeStruct((m_pad, N), jnp.float32),
        grid=(m_pad // bm,),
        in_specs=[
            pl.BlockSpec((bm, K), lambda i: (i, 0)),
            pl.BlockSpec((K, N), lambda i: (0, 0)),
            pl.BlockSpec((1, N), lambda i: (0, 0)),
        ],
        out_specs=pl.BlockSpec((bm, N), lambda i: (i, 0)),
        compiler_params=pltpu.CompilerParams(dimension_semantics=("parallel",)),
    )(x_p, w_bf16, bias_f32)
    return out[:M] if m_pad != M else out


# ----------------------------------------------------------------------------
# Kernel 2: fused bidirectional LSTM recurrence + LayerNorm for one layer.
# Single invocation (no grid): the whole layer's precomputed input gates,
# the per-step hidden outputs and the h/c state live in VMEM; time is a
# lax.fori_loop so there is no per-timestep grid/DMA overhead.
# ----------------------------------------------------------------------------
def _blstm_ln_kernel(gates_ref, whh_f_ref, whh_b_ref, gamma_ref, beta_ref,
                     out_ref, hf_seq, hb_seq, hf, cf, hb, cb):
    T, B, _ = gates_ref.shape
    H = whh_f_ref.shape[0]

    hf[...] = jnp.zeros_like(hf)
    cf[...] = jnp.zeros_like(cf)
    hb[...] = jnp.zeros_like(hb)
    cb[...] = jnp.zeros_like(cb)

    whh_f = whh_f_ref[...]          # (H, 4H) bf16
    whh_b = whh_b_ref[...]          # (H, 4H) bf16

    def lstm_cell(g_pre, h, c, whh):
        # g_pre already contains x_t @ W_ih + b_ih + b_hh (hoisted GEMM).
        g = g_pre + jnp.dot(h.astype(jnp.bfloat16), whh,
                            preferred_element_type=jnp.float32)   # (B, 4H)
        i_g = jax.nn.sigmoid(g[:, 0 * H:1 * H])
        f_g = jax.nn.sigmoid(g[:, 1 * H:2 * H])
        g_g = jnp.tanh(g[:, 2 * H:3 * H])
        o_g = jax.nn.sigmoid(g[:, 3 * H:4 * H])
        c_new = f_g * c + i_g * g_g
        h_new = o_g * jnp.tanh(c_new)
        return h_new, c_new

    def step(t, carry):
        # forward direction: time index t, gate lanes [0, 4H)
        g_row = gates_ref[t]                                     # (B, 8H)
        h_new, c_new = lstm_cell(g_row[:, :4 * H], hf[...], cf[...], whh_f)
        hf[...] = h_new
        cf[...] = c_new
        hf_seq[t] = h_new
        # backward direction: time index T-1-t, gate lanes [4H, 8H)
        s = T - 1 - t
        g_row_b = gates_ref[s]                                   # (B, 8H)
        h_new_b, c_new_b = lstm_cell(g_row_b[:, 4 * H:], hb[...], cb[...], whh_b)
        hb[...] = h_new_b
        cb[...] = c_new_b
        hb_seq[s] = h_new_b
        return carry

    lax.fori_loop(0, T, step, 0)

    # LayerNorm over the concatenated [fwd | bwd] features, single writeback.
    h_cat = jnp.concatenate([hf_seq[...], hb_seq[...]], axis=-1)  # (T, B, 2H) f32
    mean = jnp.mean(h_cat, axis=-1, keepdims=True)
    cen = h_cat - mean
    var = jnp.mean(cen * cen, axis=-1, keepdims=True)
    normed = cen * jax.lax.rsqrt(var + 1e-5)
    out_ref[...] = normed * gamma_ref[...] + beta_ref[...]


def blstm_layernorm(gates, w_hh_f_t, w_hh_b_t, gamma, beta):
    """gates: (T, B, 8H) f32 precomputed input projections (fwd | bwd)."""
    T, B, eight_h = gates.shape
    H = eight_h // 8
    vmem = pl.BlockSpec(memory_space=pltpu.MemorySpace.VMEM)
    return pl.pallas_call(
        _blstm_ln_kernel,
        out_shape=jax.ShapeDtypeStruct((T, B, 2 * H), jnp.float32),
        in_specs=[vmem, vmem, vmem, vmem, vmem],
        out_specs=vmem,
        scratch_shapes=[
            pltpu.VMEM((T, B, H), jnp.float32),   # fwd hidden sequence
            pltpu.VMEM((T, B, H), jnp.float32),   # bwd hidden sequence
            pltpu.VMEM((B, H), jnp.float32),      # h fwd
            pltpu.VMEM((B, H), jnp.float32),      # c fwd
            pltpu.VMEM((B, H), jnp.float32),      # h bwd
            pltpu.VMEM((B, H), jnp.float32),      # c bwd
        ],
    )(gates, w_hh_f_t, w_hh_b_t, gamma, beta)


# ----------------------------------------------------------------------------
# Module wrapper with deterministic parameter init (PyTorch-like shapes/ranges).
# ----------------------------------------------------------------------------
class StackedNormBLSTMPallas:
    def __init__(self, config, dropout_rate, input_type='a', is_training=True, key=None):
        self.audio_feat_dim = int(config['audio_feat_dim'])
        self.net_dim = list(config['net_dim'])
        self.num_layers = len(self.net_dim)
        self.input_type = input_type
        self.is_training = is_training
        # Kept for API parity; PyTorch forward() of StackedNormBLSTMModel never uses it.
        self.dropout_rate = float(dropout_rate)

        if key is None:
            key = jax.random.PRNGKey(0)

        self.layers = []
        in_dim = self.audio_feat_dim
        for li in range(self.num_layers):
            H = self.net_dim[li]
            k = 1.0 / (H ** 0.5)
            dir_ih, dir_hh, dir_bias = [], [], []
            for _ in range(2):          # fwd, bwd
                key, k1, k2, k3, k4 = jax.random.split(key, 5)
                w_ih = jax.random.uniform(k1, (4 * H, in_dim), jnp.float32, -k, k)
                w_hh = jax.random.uniform(k2, (4 * H, H), jnp.float32, -k, k)
                b_ih = jax.random.uniform(k3, (4 * H,), jnp.float32, -k, k)
                b_hh = jax.random.uniform(k4, (4 * H,), jnp.float32, -k, k)
                dir_ih.append(jnp.transpose(w_ih))                            # (in, 4H)
                dir_hh.append(jnp.transpose(w_hh).astype(jnp.bfloat16))       # (H, 4H)
                dir_bias.append(b_ih + b_hh)                                  # (4H,)
            self.layers.append({
                'H': H,
                # fwd and bwd input projections packed side by side -> (in, 8H)
                'w_ih_t': jnp.concatenate(dir_ih, axis=1).astype(jnp.bfloat16),
                'bias': jnp.concatenate(dir_bias).reshape(1, 8 * H),          # f32
                'w_hh_f_t': dir_hh[0],
                'w_hh_b_t': dir_hh[1],
                'gamma': jnp.ones((1, 1, 2 * H), jnp.float32),
                'beta': jnp.zeros((1, 1, 2 * H), jnp.float32),
            })
            in_dim = 2 * H

        # Final Linear; pad output columns to a lane-dense multiple of 128.
        f_out = self.audio_feat_dim
        in_fc = 2 * self.net_dim[-1]
        kf = 1.0 / (in_fc ** 0.5)
        key, k1, k2 = jax.random.split(key, 3)
        fc_w = jax.random.uniform(k1, (f_out, in_fc), jnp.float32, -kf, kf)
        fc_b = jax.random.uniform(k2, (f_out,), jnp.float32, -kf, kf)
        f_pad = _round_up(f_out, 128)
        w_pad = jnp.zeros((in_fc, f_pad), jnp.float32).at[:, :f_out].set(jnp.transpose(fc_w))
        b_pad = jnp.zeros((1, f_pad), jnp.float32).at[0, :f_out].set(fc_b)
        self.fc_w_t = w_pad.astype(jnp.bfloat16)
        self.fc_b = b_pad

    def __call__(self, net_inputs):
        # net_inputs: (B, T, audio_feat_dim) batch-first, like the PyTorch module.
        x = jnp.transpose(net_inputs.astype(jnp.float32), (1, 0, 2))   # time-major (T, B, D)
        T, B, _ = x.shape

        for lp in self.layers:
            D = x.shape[-1]
            H = lp['H']
            # Hoisted input projection for all timesteps & both directions: one GEMM.
            gates = matmul_bias(x.reshape(T * B, D), lp['w_ih_t'], lp['bias'])
            gates = gates.reshape(T, B, 8 * H)
            # Fused fwd+bwd recurrence + LayerNorm, one kernel per layer.
            x = blstm_layernorm(gates, lp['w_hh_f_t'], lp['w_hh_b_t'],
                                lp['gamma'], lp['beta'])               # (T, B, 2H)

        two_h = x.shape[-1]
        logits = matmul_bias(x.reshape(T * B, two_h), self.fc_w_t, self.fc_b)
        logits = logits[:, :self.audio_feat_dim].reshape(T, B, self.audio_feat_dim)
        return jnp.transpose(logits, (1, 0, 2))                        # (B, T, F)


if __name__ == "__main__":
    config = {'audio_feat_dim': 16, 'net_dim': [32, 32, 32]}
    model = StackedNormBLSTMPallas(config, dropout_rate=0.25, is_training=True,
                                   key=jax.random.PRNGKey(0))

    B, T = 2, 8
    x = jax.random.normal(jax.random.PRNGKey(0), (B, T, config['audio_feat_dim']),
                          jnp.float32)

    out = model(x)
    out = jax.block_until_ready(out)

    assert out.shape == (B, T, config['audio_feat_dim']), out.shape
    assert bool(jnp.all(jnp.isfinite(out)))
    print("KERNEL_OK")
</pallas_src>

<mosaic_0001>
module attributes {stable_mosaic.version = 11 : i64} {
  func.func @_matmul_bias_kernel(%arg0: i32, %arg1: memref<16x16xf32, #tpu.memory_space<vmem>>, %arg2: memref<16x256xbf16, #tpu.memory_space<vmem>>, %arg3: memref<1x256xf32, #tpu.memory_space<vmem>>, %arg4: memref<16x256xf32, #tpu.memory_space<vmem>>) attributes {dimension_semantics = [#tpu.dimension_semantics<parallel>], iteration_bounds = array<i64: 1>, scalar_prefetch = 0 : i64, scratch_operands = 0 : i64, tpu.core_type = #tpu.core_type<tc>, window_params = [{transform_indices = @transform_0, window_bounds = array<i64: 16, 16>}, {pipeline_mode = #tpu.pipeline_mode<synchronous>, transform_indices = @transform_1, window_bounds = array<i64: 16, 256>}, {pipeline_mode = #tpu.pipeline_mode<synchronous>, transform_indices = @transform_2, window_bounds = array<i64: 1, 256>}, {transform_indices = @transform_3, window_bounds = array<i64: 16, 256>}]} {
    %c0 = arith.constant 0 : index
    %c0_0 = arith.constant 0 : index
    %0 = vector.load %arg1[%c0, %c0_0] : memref<16x16xf32, #tpu.memory_space<vmem>>, vector<16x16xf32>
    %1 = arith.truncf %0 : vector<16x16xf32> to vector<16x16xbf16>
    %c0_1 = arith.constant 0 : index
    %c0_2 = arith.constant 0 : index
    %2 = vector.load %arg2[%c0_1, %c0_2] : memref<16x256xbf16, #tpu.memory_space<vmem>>, vector<16x256xbf16>
    %cst = arith.constant dense<0.000000e+00> : vector<16x256xf32>
    %3 = tpu.matmul %1, %2, %cst {dimension_numbers = #tpu.dot_dimension_numbers<[1], [0], [0], [1], [0, 0, 1, 1], [], []>} : vector<16x16xbf16>, vector<16x256xbf16>, vector<16x256xf32> -> vector<16x256xf32>
    %c0_3 = arith.constant 0 : index
    %c0_4 = arith.constant 0 : index
    %4 = vector.load %arg3[%c0_3, %c0_4] : memref<1x256xf32, #tpu.memory_space<vmem>>, vector<1x256xf32>
    %5 = vector.broadcast %4 : vector<1x256xf32> to vector<16x256xf32>
    %6 = arith.addf %3, %5 : vector<16x256xf32>
    %c0_5 = arith.constant 0 : index
    %c0_6 = arith.constant 0 : index
    %7 = vector.load %arg4[%c0_5, %c0_6] : memref<16x256xf32, #tpu.memory_space<vmem>>, vector<16x256xf32>
    tpu.vector_store %arg4[%c0_5, %c0_6], %6 {strides = array<i32>} : memref<16x256xf32, #tpu.memory_space<vmem>>, vector<16x256xf32>,
    return
  }
  func.func @transform_0(%arg0: i32) -> (i32, i32) {
    %c0_i32 = arith.constant 0 : i32
    %c0_i32_0 = arith.constant 0 : i32
    return %arg0, %c0_i32 : i32, i32
  }
  func.func @transform_1(%arg0: i32) -> (i32, i32) {
    %c0_i32 = arith.constant 0 : i32
    %c0_i32_0 = arith.constant 0 : i32
    %c0_i32_1 = arith.constant 0 : i32
    return %c0_i32, %c0_i32_0 : i32, i32
  }
  func.func @transform_2(%arg0: i32) -> (i32, i32) {
    %c0_i32 = arith.constant 0 : i32
    %c0_i32_0 = arith.constant 0 : i32
    %c0_i32_1 = arith.constant 0 : i32
    return %c0_i32, %c0_i32_0 : i32, i32
  }
  func.func @transform_3(%arg0: i32) -> (i32, i32) {
    %c0_i32 = arith.constant 0 : i32
    %c0_i32_0 = arith.constant 0 : i32
    return %arg0, %c0_i32 : i32, i32
  }
}

</mosaic_0001>

<llo_original>
// kernel: tpu_custom_call.1
$region0: #{tpu_custom_call.1}
  #allocation0 [shape = 'u32[]', space=smem, size = 0x4, offset = 0x4, fixed_abs, tag = 'smem constant byte address 0x4 - core index']
  #allocation1 [shape = 'u32[144,128]{1,0:T(1,128)}', space=vmem, size = 0x12000, scoped, tag = 'internal scratch']
  %s0 = inlined_call_operand.hbm [shape: f32[16,16], index: 0, kind: input, shape index: {}]
  %s1 = inlined_call_operand.hbm [shape: bf16[16,256], index: 1, kind: input, shape index: {}]
  %s2 = inlined_call_operand.vmem [shape: f32[1,256], index: 2, kind: input, shape index: {}]
  %s3 = inlined_call_operand.hbm [shape: f32[16,256], index: 3, kind: output, shape index: {}]
  %s4 = sld [smem:[#allocation0]]
  $region30: #{tpu_custom_call.1} parent=0
    _
  %s6 = ssub.s32 1, %s4
  %s7 = scalar_select 0, %s6, %s4
  $region1: #{tpu_custom_call.1} parent=0
    #allocation2 [shape = 'u8[8192]{0}', space=vmem, size = 0x2000, scoped, tag = 'input window, operand 0, single buffered']
    #allocation3 [shape = 's32[1]{0}', space=sflag, size = 0x4, scoped, tag = 'scoped memory for tpu_custom_call.1']
    #allocation4 [shape = 's32[1]{0}', space=sflag, size = 0x4, scoped, tag = 'scoped memory for tpu_custom_call.1']
    #allocation5 [shape = 'u8[8192]{0}', space=vmem, size = 0x2000, scoped, tag = 'input window, operand 1, single buffered']
    #allocation6 [shape = 's32[1]{0}', space=sflag, size = 0x4, scoped, tag = 'scoped memory for tpu_custom_call.1']
    #allocation7 [shape = 'u8[16384]{0}', space=vmem, size = 0x4000, scoped, tag = 'output window, operand 0, single buffered']
    %8 = vsyncpa [#allocation3], 0
    %9 = vsyncpa [#allocation6], 0
    %10 = vsyncpa [#allocation4], 0
    // Predicated region
    $region2: #{tpu_custom_call.1} parent=1 // pred_check
      _
    $region3: #{tpu_custom_call.1} parent=1 // pred_check_branch
      %12 = sbr.rel (0) target = $region5
    $region4: #{tpu_custom_call.1} parent=1 // pred_region
      %s14 = ssub.s32 256, 256
      %15 = vsyncadd [#allocation3], %s14
      %s16 = sshll.u32 [#allocation2], 4
      %s17 = int_to_ptr.vmem [resolvable:$true] %s16
      %22 = dma.hbm_to_vmem [thread:$0]  %s0, 256, %s17, [#allocation3], 128, 128, 8
    $region5: #{tpu_custom_call.1} parent=1 // pred_fallthru
      _
    // Predicated region
    $region6: #{tpu_custom_call.1} parent=1 // pred_check
      _
    $region7: #{tpu_custom_call.1} parent=1 // pred_check_branch
      %24 = sbr.rel (0) target = $region9
    $region8: #{tpu_custom_call.1} parent=1 // pred_region
      %s26 = ssub.s32 256, 256
      %27 = vsyncadd [#allocation6], %s26
      %s28 = sshll.u32 [#allocation5], 4
      %s29 = int_to_ptr.vmem [resolvable:$true] %s28
      %34 = dma.hbm_to_vmem [thread:$0]  %s1, 256, %s29, [#allocation6], 128, 128, 8
    $region9: #{tpu_custom_call.1} parent=1 // pred_fallthru
      _
    // Predicated region
    $region10: #{tpu_custom_call.1} parent=1 // pred_check
      _
    $region11: #{tpu_custom_call.1} parent=1 // pred_check_branch
      %36 = sbr.rel (0) target = $region13
    $region12: #{tpu_custom_call.1} parent=1 // pred_region
      _
    $region13: #{tpu_custom_call.1} parent=1 // pred_fallthru
      _
    // Predicated region
    $region14: #{tpu_custom_call.1} parent=1 // pred_check
      _
    $region15: #{tpu_custom_call.1} parent=1 // pred_check_branch
      %38 = sbr.rel (0) target = $region17
    $region16: #{tpu_custom_call.1} parent=1 // pred_region
      %39 = dma.done [#allocation3], 256
    $region17: #{tpu_custom_call.1} parent=1 // pred_fallthru
      _
    // Predicated region
    $region18: #{tpu_custom_call.1} parent=1 // pred_check
      _
    $region19: #{tpu_custom_call.1} parent=1 // pred_check_branch
      %41 = sbr.rel (0) target = $region21
    $region20: #{tpu_custom_call.1} parent=1 // pred_region
      %42 = dma.done [#allocation6], 256
    $region21: #{tpu_custom_call.1} parent=1 // pred_fallthru
      _
    %v44 = vld [vmem:[#allocation2] sm:$0xff]
    %v45 = vld [vmem:[#allocation2 + $0x8] sm:$0xff]
    %v46 = vpack.c.bf16 %v45, %v44
    %v47 = vld [vmem:[#allocation5] sm:$0xff]
    %v48 = vld [vmem:[#allocation5 + $0x8] sm:$0xff]
    %v49 = vld [vmem:[%s2] sm:$0x3]
    %v51 = vlaneseq
    %v52 = vshrl.u32 %v51, 7
    %v53 = vsub.s32 0, %v52
    %v54 = vrot.slane %v49, %v53
    %v55 = vlaneseq
    %v56 = vshrl.u32 %v55, 7
    %v57 = vsub.s32 1, %v56
    %v58 = vrot.slane %v49, %v57
    %v63 = vunpack.c.l.b16 %v47
    %v64 = vunpack.c.h.b16 %v47
    %v65 = vunpack.c.l.b16 %v48
    %v66 = vunpack.c.h.b16 %v48
    %v67 = vpack.c.b16 %v65, %v63
    %v68 = vpack.c.b16 %v66, %v64
    %vm71 = vcmask 130048
    %v73 = vsel %vm71, %v46, 0
    %75 = vmatprep.subr.bf16.mxu0 %v68
    %76 = vmatpush1.bf16.msra.mxu0 %v67
    %77 = vmatprep.subr.bf16.mxu0 0
    %78 = vmatpush1.bf16.msra.mxu0 0
    %79 = vmatprep.subr.bf16.mxu0 0
    %80 = vmatpush1.bf16.msra.mxu0 0
    %81 = vmatprep.subr.bf16.mxu0 0
    %82 = vmatpush1.bf16.msra.mxu0 0
    %83 = vmatprep.subr.bf16.mxu0 0
    %84 = vmatpush1.bf16.msra.mxu0 0
    %85 = vmatprep.subr.bf16.mxu0 0
    %86 = vmatpush1.bf16.msra.mxu0 0
    %87 = vmatprep.subr.bf16.mxu0 0
    %88 = vmatpush1.bf16.msra.mxu0 0
    %89 = vmatprep.subr.bf16.mxu0 0
    %90 = vmatpush1.bf16.msra.mxu0 0
    %91 = vmatprep.subr.bf16.mxu0 0
    %92 = vmatpush1.bf16.msra.mxu0 0
    %93 = vmatprep.subr.bf16.mxu0 0
    %94 = vmatpush1.bf16.msra.mxu0 0
    %95 = vmatprep.subr.bf16.mxu0 0
    %96 = vmatpush1.bf16.msra.mxu0 0
    %97 = vmatprep.subr.bf16.mxu0 0
    %98 = vmatpush1.bf16.msra.mxu0 0
    %99 = vmatprep.subr.bf16.mxu0 0
    %100 = vmatpush1.bf16.msra.mxu0 0
    %101 = vmatprep.subr.bf16.mxu0 0
    %102 = vmatpush1.bf16.msra.mxu0 0
    %103 = vmatprep.subr.bf16.mxu0 0
    %104 = vmatpush1.bf16.msra.mxu0 0
    %105 = vmatprep.subr.bf16.mxu0 0
    %106 = vmatpush1.bf16.msra.mxu0 0
    %107 = vmatprep.mubr.bf16.mxu0 0
    %108 = vmatmul.mubr.bf16.gmra.mrb[0].mxu0 %v73
    %v109 = vpop.f32.mrb[0].mxu0
    %v110 = vadd.f32 %v54, %v109
    %v111 = vpop.f32.mrb[0].mxu0
    %v112 = vadd.f32 %v58, %v111
    %v113 = vpop.f32.mrb[0].mxu0
    %v114 = vadd.f32 %v54, %v113
    %v115 = vpop.f32.mrb[0].mxu0
    %v116 = vadd.f32 %v58, %v115
    %117 = vdwg.mxu0
    %118 = vst [vmem:[#allocation7] sm:$0xff] %v110
    %119 = vst [vmem:[#allocation7 + $0x8] sm:$0xff] %v112
    %120 = vst [vmem:[#allocation7 + $0x10] sm:$0xff] %v114
    %121 = vst [vmem:[#allocation7 + $0x18] sm:$0xff] %v116
    // Predicated region
    $region22: #{tpu_custom_call.1} parent=1 // pred_check
      _
    $region23: #{tpu_custom_call.1} parent=1 // pred_check_branch
      %123 = sbr.rel (0) target = $region25
    $region24: #{tpu_custom_call.1} parent=1 // pred_region
      %s125 = ssub.s32 512, 512
      %126 = vsyncadd [#allocation4], %s125
      %s127 = sshll.u32 [#allocation7], 4
      %s128 = int_to_ptr.vmem [resolvable:$true] %s127
      %133 = dma.vmem_to_hbm [thread:$0]  %s128, 512, %s3, [#allocation4], 256, 256, 16
    $region25: #{tpu_custom_call.1} parent=1 // pred_fallthru
      _
    // Predicated region
    $region26: #{tpu_custom_call.1} parent=1 // pred_check
      _
    $region27: #{tpu_custom_call.1} parent=1 // pred_check_branch
      %135 = sbr.rel (0) target = $region29
    $region28: #{tpu_custom_call.1} parent=1 // pred_region
      %136 = dma.done [#allocation4], 512
    $region29: #{tpu_custom_call.1} parent=1 // pred_fallthru
      _
    %137 = vsyncpa [#allocation3], 1
    %138 = vsyncpa [#allocation6], 1
    %139 = vsyncpa [#allocation4], 1

</llo_original>
